<compile_context>
chip_gen: v6e
topology: v6e:2x2x1
jax: 0.10.0
libtpu: 0.0.40
codegen_flags: <defaults>
</compile_context>

<pallas_src>
import functools

import jax
import jax.numpy as jnp
from jax.experimental import pallas as pl
from jax.experimental.pallas import tpu as pltpu

DEGREE_P = 5
DEGREE_Q = 4

_WIDTH_CANDIDATES = (4096, 2048, 1024, 512, 256, 128)
_VMEM_LIMIT_BYTES = 32 * 1024 * 1024


def _rational_kernel(a_ref, b_ref, x_ref, o_ref, *, degree_p, degree_q):
    """Elementwise rational activation on one (block_rows, W) tile.

    a_ref: SMEM f32[degree_p + 1]   numerator coefficients
    b_ref: SMEM f32[degree_q]       |denominator coefficients| (abs precomputed)
    x_ref: VMEM [block_rows, W] in the input dtype
    """
    x = x_ref[...].astype(jnp.float32)

    # Numerator p(x) via Horner:  (((a5*x + a4)*x + a3)*x + ...) + a0
    p = a_ref[degree_p]
    for i in range(degree_p - 1, -1, -1):
        p = p * x + a_ref[i]

    if degree_q > 0:
        # Denominator q(x) = 1 + |x| * (|b0| + |x| * (|b1| + ...)) via Horner.
        ax = jnp.abs(x)
        t = b_ref[degree_q - 1]
        for i in range(degree_q - 2, -1, -1):
            t = t * ax + b_ref[i]
        q = 1.0 + t * ax
        # p / q -> EUP approx reciprocal + one Newton step (~1e-7 rel err,
        # needed to stay inside the 1e-5 tolerance in f32).
        r = pl.reciprocal(q, approx=True)
        r = r * (2.0 - q * r)
        o_ref[...] = (p * r).astype(o_ref.dtype)
    else:
        o_ref[...] = (p + jnp.zeros_like(x)).astype(o_ref.dtype)


def _rational_jnp(x, a_f32, b_abs, degree_p, degree_q):
    """Plain-jnp Horner fallback for the <128-element ragged tail."""
    xf = x.astype(jnp.float32)
    p = a_f32[degree_p]
    for i in range(degree_p - 1, -1, -1):
        p = p * xf + a_f32[i]
    if degree_p == 0:
        p = p * jnp.ones_like(xf)
    if degree_q > 0:
        ax = jnp.abs(xf)
        t = b_abs[degree_q - 1]
        for i in range(degree_q - 2, -1, -1):
            t = t * ax + b_abs[i]
        q = 1.0 + t * ax
    else:
        q = jnp.ones_like(xf)
    return (p / q).astype(x.dtype)


def _choose_width(n_aligned):
    """Largest lane-dense width dividing n_aligned (n_aligned % 128 == 0)."""
    for w in _WIDTH_CANDIDATES:
        if n_aligned % w == 0:
            return w
    return 128  # unreachable when n_aligned is a multiple of 128


def _is_v7():
    try:
        kind = jax.devices()[0].device_kind.lower().replace(" ", "")
    except Exception:
        return False
    return ("v7" in kind) or ("tpu7" in kind)


def rational_function(x, a, b, *, degree_p=DEGREE_P, degree_q=DEGREE_Q):
    """JAX wrapper: reshape to a lane-dense slab -> Pallas kernel -> unflatten."""
    orig_shape = x.shape
    orig_dtype = x.dtype
    n = x.size

    a_f32 = a.astype(jnp.float32)
    b_abs = jnp.abs(b).astype(jnp.float32)

    flat = x.reshape(-1)
    n_main = (n // 128) * 128

    if n_main == 0:
        # Tiny tensor (< 128 elements): not worth a kernel launch.
        return _rational_jnp(flat, a_f32, b_abs, degree_p, degree_q).reshape(orig_shape)

    if n_main == n:
        main, tail = flat, None
    else:
        # Rare ragged case: kernel covers the 128-aligned prefix, the <128
        # element tail is computed in plain jnp (no whole-tensor pad pass).
        main, tail = flat[:n_main], flat[n_main:]

    w = _choose_width(n_main)
    rows = n_main // w
    x2 = main.reshape(rows, w)

    # Dtype-aware block sizing (2 MiB v5e/v6e, 4 MiB v7x; double-buffered
    # in + out stays well under the 32 MiB scoped-VMEM limit).
    itemsize = jnp.dtype(orig_dtype).itemsize
    sublane_align = max(8, 32 // itemsize)          # 8 f32 / 16 bf16 / 32 int8,fp8
    is_v7 = _is_v7()
    target_bytes = (4 if is_v7 else 2) * 1024 * 1024

    target_rows = max(sublane_align, target_bytes // (itemsize * w))
    target_rows = (target_rows // sublane_align) * sublane_align

    if rows > target_rows:
        block_rows = target_rows                     # ragged last block masked by Pallas
    elif is_v7 and rows >= 2 * sublane_align:
        # v7x megacore: ensure >=2 grid steps so both TensorCores get work.
        half = -(-rows // 2)
        block_rows = -(-half // sublane_align) * sublane_align
    else:
        block_rows = rows                            # single full-extent block
    grid = (pl.cdiv(rows, block_rows),)

    kernel = functools.partial(_rational_kernel,
                               degree_p=degree_p, degree_q=degree_q)

    out2 = pl.pallas_call(
        kernel,
        out_shape=jax.ShapeDtypeStruct((rows, w), orig_dtype),
        grid=grid,
        in_specs=[
            pl.BlockSpec(memory_space=pltpu.SMEM),                  # a
            pl.BlockSpec(memory_space=pltpu.SMEM),                  # |b|
            pl.BlockSpec((block_rows, w), lambda i: (i, 0)),        # x tile
        ],
        out_specs=pl.BlockSpec((block_rows, w), lambda i: (i, 0)),
        compiler_params=pltpu.CompilerParams(
            dimension_semantics=("parallel",),
            vmem_limit_bytes=_VMEM_LIMIT_BYTES,
        ),
    )(a_f32, b_abs, x2)

    out_flat = out2.reshape(-1)
    if tail is not None:
        out_flat = jnp.concatenate(
            [out_flat, _rational_jnp(tail, a_f32, b_abs, degree_p, degree_q)])
    return out_flat.reshape(orig_shape)


def _reference(x, a, b, degree_p=DEGREE_P, degree_q=DEGREE_Q):
    """Pure-JAX reference mirroring the PyTorch forward exactly."""
    xf = x.astype(jnp.float32)
    p = sum(a[i] * xf ** i for i in range(degree_p + 1))
    q = 1 + sum(jnp.abs(b[i]) * jnp.abs(xf) ** (i + 1) for i in range(degree_q))
    return (p / q).astype(x.dtype)


if __name__ == "__main__":
    key = jax.random.PRNGKey(0)
    kx, ka, kb = jax.random.split(key, 3)

    # NCHW input, small shapes.
    x = jax.random.normal(kx, (2, 4, 16, 16), dtype=jnp.float32)
    # Deterministic parameter init (stands in for torch.randn in __init__).
    a = jax.random.normal(ka, (DEGREE_P + 1,), dtype=jnp.float32)
    b = jax.random.normal(kb, (DEGREE_Q,), dtype=jnp.float32)

    out = rational_function(x, a, b)
    out = jax.block_until_ready(out)

    ref = _reference(x, a, b)
    assert out.shape == x.shape and out.dtype == x.dtype
    assert jnp.allclose(out, ref, rtol=1e-5, atol=1e-5), "mismatch vs reference"

    print("KERNEL_OK")
</pallas_src>

<mosaic_0001>
module attributes {stable_mosaic.version = 11 : i64} {
  func.func @_rational_kernel(%arg0: i32, %arg1: memref<6xf32, #tpu.memory_space<smem>>, %arg2: memref<4xf32, #tpu.memory_space<smem>>, %arg3: memref<1x2048xf32, #tpu.memory_space<vmem>>, %arg4: memref<1x2048xf32, #tpu.memory_space<vmem>>) attributes {dimension_semantics = [#tpu.dimension_semantics<parallel>], iteration_bounds = array<i64: 1>, scalar_prefetch = 0 : i64, scratch_operands = 0 : i64, tpu.core_type = #tpu.core_type<tc>, window_params = [{transform_indices = @transform_0, window_bounds = array<i64: 6>}, {transform_indices = @transform_1, window_bounds = array<i64: 4>}, {transform_indices = @transform_2, window_bounds = array<i64: 1, 2048>}, {transform_indices = @transform_3, window_bounds = array<i64: 1, 2048>}]} {
    %c0 = arith.constant 0 : index
    %c0_0 = arith.constant 0 : index
    %0 = vector.load %arg3[%c0, %c0_0] : memref<1x2048xf32, #tpu.memory_space<vmem>>, vector<1x2048xf32>
    %c5 = arith.constant 5 : index
    %1 = memref.load %arg1[%c5] : memref<6xf32, #tpu.memory_space<smem>>
    %2 = vector.broadcast %1 : f32 to vector<1x2048xf32>
    %3 = arith.mulf %2, %0 : vector<1x2048xf32>
    %c4 = arith.constant 4 : index
    %4 = memref.load %arg1[%c4] : memref<6xf32, #tpu.memory_space<smem>>
    %5 = vector.broadcast %4 : f32 to vector<1x2048xf32>
    %6 = arith.addf %3, %5 : vector<1x2048xf32>
    %7 = arith.mulf %6, %0 : vector<1x2048xf32>
    %c3 = arith.constant 3 : index
    %8 = memref.load %arg1[%c3] : memref<6xf32, #tpu.memory_space<smem>>
    %9 = vector.broadcast %8 : f32 to vector<1x2048xf32>
    %10 = arith.addf %7, %9 : vector<1x2048xf32>
    %11 = arith.mulf %10, %0 : vector<1x2048xf32>
    %c2 = arith.constant 2 : index
    %12 = memref.load %arg1[%c2] : memref<6xf32, #tpu.memory_space<smem>>
    %13 = vector.broadcast %12 : f32 to vector<1x2048xf32>
    %14 = arith.addf %11, %13 : vector<1x2048xf32>
    %15 = arith.mulf %14, %0 : vector<1x2048xf32>
    %c1 = arith.constant 1 : index
    %16 = memref.load %arg1[%c1] : memref<6xf32, #tpu.memory_space<smem>>
    %17 = vector.broadcast %16 : f32 to vector<1x2048xf32>
    %18 = arith.addf %15, %17 : vector<1x2048xf32>
    %19 = arith.mulf %18, %0 : vector<1x2048xf32>
    %c0_1 = arith.constant 0 : index
    %20 = memref.load %arg1[%c0_1] : memref<6xf32, #tpu.memory_space<smem>>
    %21 = vector.broadcast %20 : f32 to vector<1x2048xf32>
    %22 = arith.addf %19, %21 : vector<1x2048xf32>
    %23 = math.absf %0 : vector<1x2048xf32>
    %c3_2 = arith.constant 3 : index
    %24 = memref.load %arg2[%c3_2] : memref<4xf32, #tpu.memory_space<smem>>
    %25 = vector.broadcast %24 : f32 to vector<1x2048xf32>
    %26 = arith.mulf %25, %23 : vector<1x2048xf32>
    %c2_3 = arith.constant 2 : index
    %27 = memref.load %arg2[%c2_3] : memref<4xf32, #tpu.memory_space<smem>>
    %28 = vector.broadcast %27 : f32 to vector<1x2048xf32>
    %29 = arith.addf %26, %28 : vector<1x2048xf32>
    %30 = arith.mulf %29, %23 : vector<1x2048xf32>
    %c1_4 = arith.constant 1 : index
    %31 = memref.load %arg2[%c1_4] : memref<4xf32, #tpu.memory_space<smem>>
    %32 = vector.broadcast %31 : f32 to vector<1x2048xf32>
    %33 = arith.addf %30, %32 : vector<1x2048xf32>
    %34 = arith.mulf %33, %23 : vector<1x2048xf32>
    %c0_5 = arith.constant 0 : index
    %35 = memref.load %arg2[%c0_5] : memref<4xf32, #tpu.memory_space<smem>>
    %36 = vector.broadcast %35 : f32 to vector<1x2048xf32>
    %37 = arith.addf %34, %36 : vector<1x2048xf32>
    %38 = arith.mulf %37, %23 : vector<1x2048xf32>
    %cst = arith.constant 1.000000e+00 : f32
    %39 = vector.broadcast %cst : f32 to vector<1x2048xf32>
    %40 = arith.addf %39, %38 : vector<1x2048xf32>
    %41 = tpu.reciprocal %40 {approx = true} : vector<1x2048xf32> -> vector<1x2048xf32>
    %42 = arith.mulf %40, %41 : vector<1x2048xf32>
    %cst_6 = arith.constant 2.000000e+00 : f32
    %43 = vector.broadcast %cst_6 : f32 to vector<1x2048xf32>
    %44 = arith.subf %43, %42 : vector<1x2048xf32>
    %45 = arith.mulf %41, %44 : vector<1x2048xf32>
    %46 = arith.mulf %22, %45 : vector<1x2048xf32>
    %c0_7 = arith.constant 0 : index
    %c0_8 = arith.constant 0 : index
    %47 = vector.load %arg4[%c0_7, %c0_8] : memref<1x2048xf32, #tpu.memory_space<vmem>>, vector<1x2048xf32>
    tpu.vector_store %arg4[%c0_7, %c0_8], %46 {strides = array<i32>} : memref<1x2048xf32, #tpu.memory_space<vmem>>, vector<1x2048xf32>,
    return
  }
  func.func @transform_0(%arg0: i32) -> i32 {
    %c0_i32 = arith.constant 0 : i32
    %c0_i32_0 = arith.constant 0 : i32
    return %c0_i32 : i32
  }
  func.func @transform_1(%arg0: i32) -> i32 {
    %c0_i32 = arith.constant 0 : i32
    %c0_i32_0 = arith.constant 0 : i32
    return %c0_i32 : i32
  }
  func.func @transform_2(%arg0: i32) -> (i32, i32) {
    %c0_i32 = arith.constant 0 : i32
    %c0_i32_0 = arith.constant 0 : i32
    return %arg0, %c0_i32 : i32, i32
  }
  func.func @transform_3(%arg0: i32) -> (i32, i32) {
    %c0_i32 = arith.constant 0 : i32
    %c0_i32_0 = arith.constant 0 : i32
    return %arg0, %c0_i32 : i32, i32
  }
}

</mosaic_0001>

<llo_original>
// kernel: tpu_custom_call.1
$region0: #{tpu_custom_call.1}
  #allocation0 [shape = 'u32[]', space=smem, size = 0x4, offset = 0x4, fixed_abs, tag = 'smem constant byte address 0x4 - core index']
  #allocation1 [shape = 'u32[144,128]{1,0:T(1,128)}', space=vmem, size = 0x12000, scoped, tag = 'internal scratch']
  %s0 = inlined_call_operand.hbm [shape: f32[6], index: 0, kind: input, shape index: {}]
  %s1 = inlined_call_operand.vmem [shape: f32[4], index: 1, kind: input, shape index: {}]
  %s2 = inlined_call_operand.hbm [shape: f32[1,2048], index: 2, kind: input, shape index: {}]
  %s3 = inlined_call_operand.hbm [shape: f32[1,2048], index: 3, kind: output, shape index: {}]
  %s4 = sld [smem:[#allocation0]]
  $region34: #{tpu_custom_call.1} parent=0
    _
  %s6 = ssub.s32 1, %s4
  %s7 = scalar_select 0, %s6, %s4
  $region1: #{tpu_custom_call.1} parent=0
    #allocation2 [shape = 'u8[512]{0}', space=smem, size = 0x200, scoped, tag = 'input window, operand 0, single buffered']
    #allocation3 [shape = 's32[1]{0}', space=sflag, size = 0x4, scoped, tag = 'scoped memory for tpu_custom_call.1']
    #allocation4 [shape = 's32[1]{0}', space=sflag, size = 0x4, scoped, tag = 'scoped memory for tpu_custom_call.1']
    #allocation5 [shape = 's32[1]{0}', space=sflag, size = 0x4, scoped, tag = 'scoped memory for tpu_custom_call.1']
    #allocation6 [shape = 's32[1]{0}', space=sflag, size = 0x4, scoped, tag = 'scoped memory for tpu_custom_call.1']
    #allocation7 [shape = 'u8[512]{0}', space=smem, size = 0x200, scoped, tag = 'input window, operand 1, single buffered']
    #allocation8 [shape = 'u8[8192]{0}', space=vmem, size = 0x2000, scoped, tag = 'input window, operand 2, single buffered']
    #allocation9 [shape = 'u8[8192]{0}', space=vmem, size = 0x2000, scoped, tag = 'output window, operand 0, single buffered']
    %8 = vsyncpa [#allocation5], 0
    %9 = vsyncpa [#allocation6], 0
    %10 = vsyncpa [#allocation3], 0
    %11 = vsyncpa [#allocation4], 0
    // Predicated region
    $region2: #{tpu_custom_call.1} parent=1 // pred_check
      _
    $region3: #{tpu_custom_call.1} parent=1 // pred_check_branch
      %13 = sbr.rel (0) target = $region5
    $region4: #{tpu_custom_call.1} parent=1 // pred_region
      %s15 = ssub.s32 16, 16
      %16 = vsyncadd [#allocation5], %s15
      %19 = dma.hbm_to_smem %s0, 16, [#allocation2], [#allocation5]
    $region5: #{tpu_custom_call.1} parent=1 // pred_fallthru
      _
    // Predicated region
    $region6: #{tpu_custom_call.1} parent=1 // pred_check
      _
    $region7: #{tpu_custom_call.1} parent=1 // pred_check_branch
      %21 = sbr.rel (0) target = $region9
    $region8: #{tpu_custom_call.1} parent=1 // pred_region
      %s23 = ssub.s32 16, 16
      %24 = vsyncadd [#allocation6], %s23
      %s26 = sshll.u32 %s1, 4
      %s27 = int_to_ptr.vmem [resolvable:$true] %s26
      %29 = dma.vmem_to_smem %s27, 16, [#allocation7], [#allocation6]
    $region9: #{tpu_custom_call.1} parent=1 // pred_fallthru
      _
    // Predicated region
    $region10: #{tpu_custom_call.1} parent=1 // pred_check
      _
    $region11: #{tpu_custom_call.1} parent=1 // pred_check_branch
      %31 = sbr.rel (0) target = $region13
    $region12: #{tpu_custom_call.1} parent=1 // pred_region
      %s33 = ssub.s32 256, 256
      %34 = vsyncadd [#allocation3], %s33
      %s36 = sshll.u32 [#allocation8], 4
      %s37 = int_to_ptr.vmem [resolvable:$true] %s36
      %39 = dma.hbm_to_vmem [thread:$0]  %s2, 256, %s37, [#allocation3]
    $region13: #{tpu_custom_call.1} parent=1 // pred_fallthru
      _
    // Predicated region
    $region14: #{tpu_custom_call.1} parent=1 // pred_check
      _
    $region15: #{tpu_custom_call.1} parent=1 // pred_check_branch
      %41 = sbr.rel (0) target = $region17
    $region16: #{tpu_custom_call.1} parent=1 // pred_region
      %42 = dma.done [#allocation5], 16
    $region17: #{tpu_custom_call.1} parent=1 // pred_fallthru
      _
    // Predicated region
    $region18: #{tpu_custom_call.1} parent=1 // pred_check
      _
    $region19: #{tpu_custom_call.1} parent=1 // pred_check_branch
      %44 = sbr.rel (0) target = $region21
    $region20: #{tpu_custom_call.1} parent=1 // pred_region
      %45 = dma.done [#allocation6], 16
    $region21: #{tpu_custom_call.1} parent=1 // pred_fallthru
      _
    // Predicated region
    $region22: #{tpu_custom_call.1} parent=1 // pred_check
      _
    $region23: #{tpu_custom_call.1} parent=1 // pred_check_branch
      %47 = sbr.rel (0) target = $region25
    $region24: #{tpu_custom_call.1} parent=1 // pred_region
      %48 = dma.done [#allocation3], 256
    $region25: #{tpu_custom_call.1} parent=1 // pred_fallthru
      _
    %49 = sfence
    %v50 = vld [vmem:[#allocation8] sm:$0xff]
    %v51 = vld [vmem:[#allocation8 + $0x8] sm:$0xff]
    %s52 = sld [smem:[#allocation2 + $0x5]]
    %v53 = vstv %s52
    %v54 = vmul.f32 %v53, %v50
    %v55 = vmul.f32 %v53, %v51
    %s56 = sld [smem:[#allocation2 + $0x4]]
    %v57 = vstv %s56
    %v58 = vadd.f32 %v54, %v57
    %v59 = vadd.f32 %v55, %v57
    %v60 = vmul.f32 %v58, %v50
    %v61 = vmul.f32 %v59, %v51
    %s62 = sld [smem:[#allocation2 + $0x3]]
    %v63 = vstv %s62
    %v64 = vadd.f32 %v60, %v63
    %v65 = vadd.f32 %v61, %v63
    %v66 = vmul.f32 %v64, %v50
    %v67 = vmul.f32 %v65, %v51
    %s68 = sld [smem:[#allocation2 + $0x2]]
    %v69 = vstv %s68
    %v70 = vadd.f32 %v66, %v69
    %v71 = vadd.f32 %v67, %v69
    %v72 = vmul.f32 %v70, %v50
    %v73 = vmul.f32 %v71, %v51
    %s74 = sld [smem:[#allocation2 + $0x1]]
    %v75 = vstv %s74
    %v76 = vadd.f32 %v72, %v75
    %v77 = vadd.f32 %v73, %v75
    %v78 = vmul.f32 %v76, %v50
    %v79 = vmul.f32 %v77, %v51
    %s80 = sld [smem:[#allocation2]]
    %v81 = vstv %s80
    %v82 = vadd.f32 %v78, %v81
    %v83 = vadd.f32 %v79, %v81
    %v84 = vand.u32 2147483647, %v50
    %v85 = vand.u32 2147483647, %v51
    %s86 = sld [smem:[#allocation7 + $0x3]]
    %v87 = vstv %s86
    %v88 = vmul.f32 %v87, %v84
    %v89 = vmul.f32 %v87, %v85
    %s90 = sld [smem:[#allocation7 + $0x2]]
    %v91 = vstv %s90
    %v92 = vadd.f32 %v88, %v91
    %v93 = vadd.f32 %v89, %v91
    %v94 = vmul.f32 %v92, %v84
    %v95 = vmul.f32 %v93, %v85
    %s96 = sld [smem:[#allocation7 + $0x1]]
    %v97 = vstv %s96
    %v98 = vadd.f32 %v94, %v97
    %v99 = vadd.f32 %v95, %v97
    %v100 = vmul.f32 %v98, %v84
    %v101 = vmul.f32 %v99, %v85
    %s102 = sld [smem:[#allocation7]]
    %v103 = vstv %s102
    %v104 = vadd.f32 %v100, %v103
    %v105 = vadd.f32 %v101, %v103
    %v106 = vmul.f32 %v104, %v84
    %v107 = vmul.f32 %v105, %v85
    %v108 = vadd.f32 %v106, 1.0
    %v109 = vadd.f32 %v107, 1.0
    %v110 = vrcp.pop %v108
    %v111 = vrcp.pop %v109
    %v112 = vmul.f32 %v108, %v110
    %v113 = vmul.f32 %v109, %v111
    %v114 = vsub.f32 2.0, %v112
    %v115 = vsub.f32 2.0, %v113
    %v116 = vmul.f32 %v110, %v114
    %v117 = vmul.f32 %v111, %v115
    %v118 = vmul.f32 %v82, %v116
    %v119 = vmul.f32 %v83, %v117
    %120 = vst [vmem:[#allocation9] sm:$0xff] %v118
    %121 = vst [vmem:[#allocation9 + $0x8] sm:$0xff] %v119
    // Predicated region
    $region26: #{tpu_custom_call.1} parent=1 // pred_check
      _
    $region27: #{tpu_custom_call.1} parent=1 // pred_check_branch
      %123 = sbr.rel (0) target = $region29
    $region28: #{tpu_custom_call.1} parent=1 // pred_region
      %s125 = ssub.s32 256, 256
      %126 = vsyncadd [#allocation4], %s125
      %s128 = sshll.u32 [#allocation9], 4
      %s129 = int_to_ptr.vmem [resolvable:$true] %s128
      %131 = dma.vmem_to_hbm [thread:$0]  %s129, 256, %s3, [#allocation4]
    $region29: #{tpu_custom_call.1} parent=1 // pred_fallthru
      _
    // Predicated region
    $region30: #{tpu_custom_call.1} parent=1 // pred_check
      _
    $region31: #{tpu_custom_call.1} parent=1 // pred_check_branch
      %133 = sbr.rel (0) target = $region33
    $region32: #{tpu_custom_call.1} parent=1 // pred_region
      %134 = dma.done [#allocation4], 256
    $region33: #{tpu_custom_call.1} parent=1 // pred_fallthru
      _
    %135 = vsyncpa [#allocation3], 1
    %136 = vsyncpa [#allocation4], 1
    %137 = vsyncpa [#allocation5], 1
    %138 = vsyncpa [#allocation6], 1

</llo_original>
